<compile_context>
chip_gen: v5e
topology: v5e:2x2
jax: 0.10.0
libtpu: 0.0.40
codegen_flags: <defaults>
</compile_context>

<pallas_src>
import jax
import jax.numpy as jnp
from jax.experimental import pallas as pl
from jax.experimental.pallas import tpu as pltpu

LANE = 128          # TPU lane width; also the in-kernel chunk size
MAX_TB = 4096       # cap on the per-grid-step batch tile (lane columns)
TARGET_STEPS = 8    # aim for >= 8 grid steps (v7x: 2 TCs x >= 4 pipelined steps)

# --- packed parameter layout: [P_ROWS, 128] f32, every row lane-replicated --------
R_W1_0 = 0        # rows   0:16   W1[:, 0]
R_W1_1 = 16       # rows  16:32   W1[:, 1]
R_B1   = 32       # rows  32:48   b1
R_W2   = 48       # rows  48:176  W2[:, i] for i = 0..15, 8 rows per block
R_B2   = 176      # rows 176:184  b2
R_W3   = 184      # rows 184:192  W3[0, :] laid down the sublanes (for the reduce)
R_B3   = 192      # row  192      b3
P_ROWS = 200      # 193 used rows padded up to a sublane multiple


def pack_params(params):
    """Pack (W1,b1,W2,b2,W3,b3) (PyTorch [out,in]/[out]) into one lane-broadcast buffer."""
    w1, b1, w2, b2, w3, b3 = [jnp.asarray(p, jnp.float32) for p in params]
    rows = [
        jnp.broadcast_to(w1[:, 0:1], (16, LANE)),
        jnp.broadcast_to(w1[:, 1:2], (16, LANE)),
        jnp.broadcast_to(b1[:, None], (16, LANE)),
    ]
    rows += [jnp.broadcast_to(w2[:, i:i + 1], (8, LANE)) for i in range(16)]
    rows += [
        jnp.broadcast_to(b2[:, None], (8, LANE)),
        jnp.broadcast_to(w3[0, :, None], (8, LANE)),   # W3 column -> sublanes
        jnp.broadcast_to(b3[:, None], (1, LANE)),
    ]
    buf = jnp.concatenate(rows, axis=0)                # [193, 128]
    return jnp.pad(buf, ((0, P_ROWS - buf.shape[0]), (0, 0)))


def mlp_kernel(x_ref, p_ref, o_ref):
    # Parameter rows loaded once per grid step (~25 vregs); they stay resident across
    # the unrolled chunk loop, feeding the VPU with no per-MAC weight broadcasts.
    w1b0 = p_ref[R_W1_0:R_W1_0 + 16, :]
    w1b1 = p_ref[R_W1_1:R_W1_1 + 16, :]
    b1b = p_ref[R_B1:R_B1 + 16, :]
    w2b = [p_ref[R_W2 + 8 * i:R_W2 + 8 * i + 8, :] for i in range(16)]
    b2b = p_ref[R_B2:R_B2 + 8, :]
    w3b = p_ref[R_W3:R_W3 + 8, :]
    b3b = p_ref[R_B3:R_B3 + 1, :]

    n_chunks = x_ref.shape[1] // LANE     # static: tb is a multiple of LANE
    # Static full unroll (equivalent to lax.fori_loop(..., unroll=True) for these
    # tiny trip counts): keeps intermediates vreg-resident, all offsets static.
    for c in range(n_chunks):
        lo = c * LANE
        x0 = x_ref[0:1, lo:lo + LANE]                              # [1, 128]
        x1 = x_ref[1:2, lo:lo + LANE]
        # Layer 1: 2-wide VPU broadcast-MAC.
        h1 = jnp.maximum(w1b0 * x0 + w1b1 * x1 + b1b, 0.0)        # [16, 128]
        # Layer 2: 16-wide broadcast-MAC; weights are pre-broadcast rows, only the
        # h1-row sublane broadcast (XLU) remains per iteration.
        acc = b2b
        for i in range(16):
            acc = acc + w2b[i] * h1[i:i + 1, :]                    # [8, 128]
        h2 = jnp.maximum(acc, 0.0)
        # Layer 3: one full-width multiply + cross-sublane reduction.
        z = jnp.sum(w3b * h2, axis=0, keepdims=True) + b3b         # [1, 128]
        # Numerically stable sigmoid; exp and the approximate reciprocal both run on
        # the EUP slot, off the VALU critical path.
        e = jnp.exp(-jnp.abs(z))
        sig = jnp.where(z >= 0.0, 1.0, e) * pl.reciprocal(1.0 + e, approx=True)
        o_ref[0:1, lo:lo + LANE] = sig.astype(o_ref.dtype)


@jax.jit
def simple_nn_forward(x, packed):
    """x: [B, 2] float32, packed = pack_params(...) -> [B, 1] float32."""
    B = x.shape[0]
    B128 = pl.cdiv(B, LANE) * LANE                 # pad batch to the lane width only
    xt = x.T                                       # [2, B]  batch -> lanes
    if B128 != B:
        xt = jnp.pad(xt, ((0, 0), (0, B128 - B)))

    # Per-step tile: multiple of LANE, targeting >= TARGET_STEPS grid steps, capped at
    # MAX_TB.  The last grid tile may be partial; Pallas clips its DMAs.
    tb = min(MAX_TB, pl.cdiv(pl.cdiv(B128, TARGET_STEPS), LANE) * LANE)
    tb = max(tb, LANE)
    grid = (pl.cdiv(B128, tb),)

    out = pl.pallas_call(
        mlp_kernel,
        out_shape=jax.ShapeDtypeStruct((1, B128), jnp.float32),
        grid=grid,
        in_specs=[
            pl.BlockSpec((2, tb), lambda i: (0, i)),            # x tile (pipelined)
            pl.BlockSpec((P_ROWS, LANE), lambda i: (0, 0)),     # params (resident)
        ],
        out_specs=pl.BlockSpec((1, tb), lambda i: (0, i)),      # lane-dense store
        compiler_params=pltpu.CompilerParams(
            dimension_semantics=("parallel",)),                 # megacore split (v7x)
    )(xt, packed)

    return out[:, :B].T                                         # [B, 1]


def init_params(key):
    """PyTorch nn.Linear-style init: W [out,in], b [out], U(-1/sqrt(fan_in), +)."""
    def linear(key, fan_in, fan_out):
        kw, kb = jax.random.split(key)
        bound = 1.0 / jnp.sqrt(fan_in)
        w = jax.random.uniform(kw, (fan_out, fan_in), jnp.float32, -bound, bound)
        b = jax.random.uniform(kb, (fan_out,), jnp.float32, -bound, bound)
        return w, b

    k1, k2, k3 = jax.random.split(key, 3)
    w1, b1 = linear(k1, 2, 16)
    w2, b2 = linear(k2, 16, 8)
    w3, b3 = linear(k3, 8, 1)
    return w1, b1, w2, b2, w3, b3


def reference_forward(x, params):
    w1, b1, w2, b2, w3, b3 = params
    h1 = jnp.maximum(x @ w1.T + b1, 0.0)
    h2 = jnp.maximum(h1 @ w2.T + b2, 0.0)
    return jax.nn.sigmoid(h2 @ w3.T + b3)


if __name__ == "__main__":
    key = jax.random.PRNGKey(0)
    kx, kp = jax.random.split(key)
    params = init_params(kp)
    packed = pack_params(params)

    # Tolerance is loose-ish because the in-kernel sigmoid uses the EUP's approximate
    # reciprocal (per the perf review); a real indexing/packing bug would be >> 5e-3.
    TOL = dict(atol=5e-3, rtol=5e-3)

    # Small batch: single 128-wide lane tile, grid = (1,).
    x = jax.random.normal(kx, (8, 2), jnp.float32)
    out = jax.block_until_ready(simple_nn_forward(x, packed))
    ref = reference_forward(x, params)
    assert out.shape == (8, 1)
    assert bool(jnp.allclose(out, ref, **TOL)), "mismatch vs reference (small batch)"

    # Larger non-multiple batch: exercises lane padding (1100 -> 1152), a multi-step
    # pipelined grid (tb = 256, grid = (5,)) and a partial last tile.
    x2 = jax.random.normal(kx, (1100, 2), jnp.float32)
    out2 = jax.block_until_ready(simple_nn_forward(x2, packed))
    ref2 = reference_forward(x2, params)
    assert out2.shape == (1100, 1)
    assert bool(jnp.allclose(out2, ref2, **TOL)), "mismatch vs reference (grid)"

    print("KERNEL_OK")
</pallas_src>

<mosaic_0001>
module attributes {stable_mosaic.version = 11 : i64} {
  func.func @mlp_kernel(%arg0: i32, %arg1: memref<2x128xf32, #tpu.memory_space<vmem>>, %arg2: memref<200x128xf32, #tpu.memory_space<vmem>>, %arg3: memref<1x128xf32, #tpu.memory_space<vmem>>) attributes {dimension_semantics = [#tpu.dimension_semantics<parallel>], iteration_bounds = array<i64: 1>, scalar_prefetch = 0 : i64, scratch_operands = 0 : i64, tpu.core_type = #tpu.core_type<tc>, window_params = [{transform_indices = @transform_0, window_bounds = array<i64: 2, 128>}, {pipeline_mode = #tpu.pipeline_mode<synchronous>, transform_indices = @transform_1, window_bounds = array<i64: 200, 128>}, {transform_indices = @transform_2, window_bounds = array<i64: 1, 128>}]} {
    %c0 = arith.constant 0 : index
    %c0_0 = arith.constant 0 : index
    %0 = vector.load %arg2[%c0, %c0_0] : memref<200x128xf32, #tpu.memory_space<vmem>>, vector<16x128xf32>
    %c16 = arith.constant 16 : index
    %c0_1 = arith.constant 0 : index
    %1 = vector.load %arg2[%c16, %c0_1] : memref<200x128xf32, #tpu.memory_space<vmem>>, vector<16x128xf32>
    %c32 = arith.constant 32 : index
    %c0_2 = arith.constant 0 : index
    %2 = vector.load %arg2[%c32, %c0_2] : memref<200x128xf32, #tpu.memory_space<vmem>>, vector<16x128xf32>
    %c48 = arith.constant 48 : index
    %c0_3 = arith.constant 0 : index
    %3 = vector.load %arg2[%c48, %c0_3] : memref<200x128xf32, #tpu.memory_space<vmem>>, vector<8x128xf32>
    %c56 = arith.constant 56 : index
    %c0_4 = arith.constant 0 : index
    %4 = vector.load %arg2[%c56, %c0_4] : memref<200x128xf32, #tpu.memory_space<vmem>>, vector<8x128xf32>
    %c64 = arith.constant 64 : index
    %c0_5 = arith.constant 0 : index
    %5 = vector.load %arg2[%c64, %c0_5] : memref<200x128xf32, #tpu.memory_space<vmem>>, vector<8x128xf32>
    %c72 = arith.constant 72 : index
    %c0_6 = arith.constant 0 : index
    %6 = vector.load %arg2[%c72, %c0_6] : memref<200x128xf32, #tpu.memory_space<vmem>>, vector<8x128xf32>
    %c80 = arith.constant 80 : index
    %c0_7 = arith.constant 0 : index
    %7 = vector.load %arg2[%c80, %c0_7] : memref<200x128xf32, #tpu.memory_space<vmem>>, vector<8x128xf32>
    %c88 = arith.constant 88 : index
    %c0_8 = arith.constant 0 : index
    %8 = vector.load %arg2[%c88, %c0_8] : memref<200x128xf32, #tpu.memory_space<vmem>>, vector<8x128xf32>
    %c96 = arith.constant 96 : index
    %c0_9 = arith.constant 0 : index
    %9 = vector.load %arg2[%c96, %c0_9] : memref<200x128xf32, #tpu.memory_space<vmem>>, vector<8x128xf32>
    %c104 = arith.constant 104 : index
    %c0_10 = arith.constant 0 : index
    %10 = vector.load %arg2[%c104, %c0_10] : memref<200x128xf32, #tpu.memory_space<vmem>>, vector<8x128xf32>
    %c112 = arith.constant 112 : index
    %c0_11 = arith.constant 0 : index
    %11 = vector.load %arg2[%c112, %c0_11] : memref<200x128xf32, #tpu.memory_space<vmem>>, vector<8x128xf32>
    %c120 = arith.constant 120 : index
    %c0_12 = arith.constant 0 : index
    %12 = vector.load %arg2[%c120, %c0_12] : memref<200x128xf32, #tpu.memory_space<vmem>>, vector<8x128xf32>
    %c128 = arith.constant 128 : index
    %c0_13 = arith.constant 0 : index
    %13 = vector.load %arg2[%c128, %c0_13] : memref<200x128xf32, #tpu.memory_space<vmem>>, vector<8x128xf32>
    %c136 = arith.constant 136 : index
    %c0_14 = arith.constant 0 : index
    %14 = vector.load %arg2[%c136, %c0_14] : memref<200x128xf32, #tpu.memory_space<vmem>>, vector<8x128xf32>
    %c144 = arith.constant 144 : index
    %c0_15 = arith.constant 0 : index
    %15 = vector.load %arg2[%c144, %c0_15] : memref<200x128xf32, #tpu.memory_space<vmem>>, vector<8x128xf32>
    %c152 = arith.constant 152 : index
    %c0_16 = arith.constant 0 : index
    %16 = vector.load %arg2[%c152, %c0_16] : memref<200x128xf32, #tpu.memory_space<vmem>>, vector<8x128xf32>
    %c160 = arith.constant 160 : index
    %c0_17 = arith.constant 0 : index
    %17 = vector.load %arg2[%c160, %c0_17] : memref<200x128xf32, #tpu.memory_space<vmem>>, vector<8x128xf32>
    %c168 = arith.constant 168 : index
    %c0_18 = arith.constant 0 : index
    %18 = vector.load %arg2[%c168, %c0_18] : memref<200x128xf32, #tpu.memory_space<vmem>>, vector<8x128xf32>
    %c176 = arith.constant 176 : index
    %c0_19 = arith.constant 0 : index
    %19 = vector.load %arg2[%c176, %c0_19] : memref<200x128xf32, #tpu.memory_space<vmem>>, vector<8x128xf32>
    %c184 = arith.constant 184 : index
    %c0_20 = arith.constant 0 : index
    %20 = vector.load %arg2[%c184, %c0_20] : memref<200x128xf32, #tpu.memory_space<vmem>>, vector<8x128xf32>
    %c192 = arith.constant 192 : index
    %c0_21 = arith.constant 0 : index
    %21 = vector.load %arg2[%c192, %c0_21] : memref<200x128xf32, #tpu.memory_space<vmem>>, vector<1x128xf32>
    %c0_22 = arith.constant 0 : index
    %c0_23 = arith.constant 0 : index
    %22 = vector.load %arg1[%c0_22, %c0_23] : memref<2x128xf32, #tpu.memory_space<vmem>>, vector<1x128xf32>
    %c1 = arith.constant 1 : index
    %c0_24 = arith.constant 0 : index
    %23 = vector.load %arg1[%c1, %c0_24] : memref<2x128xf32, #tpu.memory_space<vmem>>, vector<1x128xf32>
    %24 = vector.broadcast %22 : vector<1x128xf32> to vector<16x128xf32>
    %25 = arith.mulf %0, %24 : vector<16x128xf32>
    %26 = vector.broadcast %23 : vector<1x128xf32> to vector<16x128xf32>
    %27 = arith.mulf %1, %26 : vector<16x128xf32>
    %28 = arith.addf %25, %27 : vector<16x128xf32>
    %29 = arith.addf %28, %2 : vector<16x128xf32>
    %cst = arith.constant 0.000000e+00 : f32
    %30 = vector.broadcast %cst : f32 to vector<16x128xf32>
    %31 = arith.maximumf %29, %30 : vector<16x128xf32>
    %32 = vector.extract_strided_slice %31 {offsets = [0, 0], sizes = [1, 128], strides = [1, 1]} : vector<16x128xf32> to vector<1x128xf32>
    %33 = vector.broadcast %32 : vector<1x128xf32> to vector<8x128xf32>
    %34 = arith.mulf %3, %33 : vector<8x128xf32>
    %35 = arith.addf %19, %34 : vector<8x128xf32>
    %36 = vector.extract_strided_slice %31 {offsets = [1, 0], sizes = [1, 128], strides = [1, 1]} : vector<16x128xf32> to vector<1x128xf32>
    %37 = vector.broadcast %36 : vector<1x128xf32> to vector<8x128xf32>
    %38 = arith.mulf %4, %37 : vector<8x128xf32>
    %39 = arith.addf %35, %38 : vector<8x128xf32>
    %40 = vector.extract_strided_slice %31 {offsets = [2, 0], sizes = [1, 128], strides = [1, 1]} : vector<16x128xf32> to vector<1x128xf32>
    %41 = vector.broadcast %40 : vector<1x128xf32> to vector<8x128xf32>
    %42 = arith.mulf %5, %41 : vector<8x128xf32>
    %43 = arith.addf %39, %42 : vector<8x128xf32>
    %44 = vector.extract_strided_slice %31 {offsets = [3, 0], sizes = [1, 128], strides = [1, 1]} : vector<16x128xf32> to vector<1x128xf32>
    %45 = vector.broadcast %44 : vector<1x128xf32> to vector<8x128xf32>
    %46 = arith.mulf %6, %45 : vector<8x128xf32>
    %47 = arith.addf %43, %46 : vector<8x128xf32>
    %48 = vector.extract_strided_slice %31 {offsets = [4, 0], sizes = [1, 128], strides = [1, 1]} : vector<16x128xf32> to vector<1x128xf32>
    %49 = vector.broadcast %48 : vector<1x128xf32> to vector<8x128xf32>
    %50 = arith.mulf %7, %49 : vector<8x128xf32>
    %51 = arith.addf %47, %50 : vector<8x128xf32>
    %52 = vector.extract_strided_slice %31 {offsets = [5, 0], sizes = [1, 128], strides = [1, 1]} : vector<16x128xf32> to vector<1x128xf32>
    %53 = vector.broadcast %52 : vector<1x128xf32> to vector<8x128xf32>
    %54 = arith.mulf %8, %53 : vector<8x128xf32>
    %55 = arith.addf %51, %54 : vector<8x128xf32>
    %56 = vector.extract_strided_slice %31 {offsets = [6, 0], sizes = [1, 128], strides = [1, 1]} : vector<16x128xf32> to vector<1x128xf32>
    %57 = vector.broadcast %56 : vector<1x128xf32> to vector<8x128xf32>
    %58 = arith.mulf %9, %57 : vector<8x128xf32>
    %59 = arith.addf %55, %58 : vector<8x128xf32>
    %60 = vector.extract_strided_slice %31 {offsets = [7, 0], sizes = [1, 128], strides = [1, 1]} : vector<16x128xf32> to vector<1x128xf32>
    %61 = vector.broadcast %60 : vector<1x128xf32> to vector<8x128xf32>
    %62 = arith.mulf %10, %61 : vector<8x128xf32>
    %63 = arith.addf %59, %62 : vector<8x128xf32>
    %64 = vector.extract_strided_slice %31 {offsets = [8, 0], sizes = [1, 128], strides = [1, 1]} : vector<16x128xf32> to vector<1x128xf32>
    %65 = vector.broadcast %64 : vector<1x128xf32> to vector<8x128xf32>
    %66 = arith.mulf %11, %65 : vector<8x128xf32>
    %67 = arith.addf %63, %66 : vector<8x128xf32>
    %68 = vector.extract_strided_slice %31 {offsets = [9, 0], sizes = [1, 128], strides = [1, 1]} : vector<16x128xf32> to vector<1x128xf32>
    %69 = vector.broadcast %68 : vector<1x128xf32> to vector<8x128xf32>
    %70 = arith.mulf %12, %69 : vector<8x128xf32>
    %71 = arith.addf %67, %70 : vector<8x128xf32>
    %72 = vector.extract_strided_slice %31 {offsets = [10, 0], sizes = [1, 128], strides = [1, 1]} : vector<16x128xf32> to vector<1x128xf32>
    %73 = vector.broadcast %72 : vector<1x128xf32> to vector<8x128xf32>
    %74 = arith.mulf %13, %73 : vector<8x128xf32>
    %75 = arith.addf %71, %74 : vector<8x128xf32>
    %76 = vector.extract_strided_slice %31 {offsets = [11, 0], sizes = [1, 128], strides = [1, 1]} : vector<16x128xf32> to vector<1x128xf32>
    %77 = vector.broadcast %76 : vector<1x128xf32> to vector<8x128xf32>
    %78 = arith.mulf %14, %77 : vector<8x128xf32>
    %79 = arith.addf %75, %78 : vector<8x128xf32>
    %80 = vector.extract_strided_slice %31 {offsets = [12, 0], sizes = [1, 128], strides = [1, 1]} : vector<16x128xf32> to vector<1x128xf32>
    %81 = vector.broadcast %80 : vector<1x128xf32> to vector<8x128xf32>
    %82 = arith.mulf %15, %81 : vector<8x128xf32>
    %83 = arith.addf %79, %82 : vector<8x128xf32>
    %84 = vector.extract_strided_slice %31 {offsets = [13, 0], sizes = [1, 128], strides = [1, 1]} : vector<16x128xf32> to vector<1x128xf32>
    %85 = vector.broadcast %84 : vector<1x128xf32> to vector<8x128xf32>
    %86 = arith.mulf %16, %85 : vector<8x128xf32>
    %87 = arith.addf %83, %86 : vector<8x128xf32>
    %88 = vector.extract_strided_slice %31 {offsets = [14, 0], sizes = [1, 128], strides = [1, 1]} : vector<16x128xf32> to vector<1x128xf32>
    %89 = vector.broadcast %88 : vector<1x128xf32> to vector<8x128xf32>
    %90 = arith.mulf %17, %89 : vector<8x128xf32>
    %91 = arith.addf %87, %90 : vector<8x128xf32>
    %92 = vector.extract_strided_slice %31 {offsets = [15, 0], sizes = [1, 128], strides = [1, 1]} : vector<16x128xf32> to vector<1x128xf32>
    %93 = vector.broadcast %92 : vector<1x128xf32> to vector<8x128xf32>
    %94 = arith.mulf %18, %93 : vector<8x128xf32>
    %95 = arith.addf %91, %94 : vector<8x128xf32>
    %cst_25 = arith.constant 0.000000e+00 : f32
    %96 = vector.broadcast %cst_25 : f32 to vector<8x128xf32>
    %97 = arith.maximumf %95, %96 : vector<8x128xf32>
    %98 = arith.mulf %20, %97 : vector<8x128xf32>
    %cst_26 = arith.constant dense<0.000000e+00> : vector<128xf32>
    %99 = vector.multi_reduction <add>, %98, %cst_26 [0] : vector<8x128xf32> to vector<128xf32>
    %100 = vector.shape_cast %99 : vector<128xf32> to vector<1x128xf32>
    %101 = arith.addf %100, %21 : vector<1x128xf32>
    %102 = math.absf %101 : vector<1x128xf32>
    %cst_27 = arith.constant 0.000000e+00 : f32
    %103 = vector.broadcast %cst_27 : f32 to vector<1x128xf32>
    %104 = arith.subf %103, %102 : vector<1x128xf32>
    %105 = math.exp %104 : vector<1x128xf32>
    %cst_28 = arith.constant 0.000000e+00 : f32
    %106 = vector.broadcast %cst_28 : f32 to vector<1x128xf32>
    %107 = arith.cmpf oge, %101, %106 : vector<1x128xf32>
    %cst_29 = arith.constant 1.000000e+00 : f32
    %108 = vector.broadcast %cst_29 : f32 to vector<1x128xf32>
    %109 = arith.select %107, %108, %105 : vector<1x128xi1>, vector<1x128xf32>
    %cst_30 = arith.constant 1.000000e+00 : f32
    %110 = vector.broadcast %cst_30 : f32 to vector<1x128xf32>
    %111 = arith.addf %110, %105 : vector<1x128xf32>
    %112 = tpu.reciprocal %111 {approx = true} : vector<1x128xf32> -> vector<1x128xf32>
    %113 = arith.mulf %109, %112 : vector<1x128xf32>
    %c0_31 = arith.constant 0 : index
    %c0_32 = arith.constant 0 : index
    %114 = vector.load %arg3[%c0_31, %c0_32] : memref<1x128xf32, #tpu.memory_space<vmem>>, vector<1x128xf32>
    tpu.vector_store %arg3[%c0_31, %c0_32], %113 {strides = array<i32>} : memref<1x128xf32, #tpu.memory_space<vmem>>, vector<1x128xf32>,
    return
  }
  func.func @transform_0(%arg0: i32) -> (i32, i32) {
    %c0_i32 = arith.constant 0 : i32
    %c0_i32_0 = arith.constant 0 : i32
    return %c0_i32, %arg0 : i32, i32
  }
  func.func @transform_1(%arg0: i32) -> (i32, i32) {
    %c0_i32 = arith.constant 0 : i32
    %c0_i32_0 = arith.constant 0 : i32
    %c0_i32_1 = arith.constant 0 : i32
    return %c0_i32, %c0_i32_0 : i32, i32
  }
  func.func @transform_2(%arg0: i32) -> (i32, i32) {
    %c0_i32 = arith.constant 0 : i32
    %c0_i32_0 = arith.constant 0 : i32
    return %c0_i32, %arg0 : i32, i32
  }
}

</mosaic_0001>

<llo_original>
// kernel: simple_nn_forward.1
$region0: #{simple_nn_forward.1}
  #allocation0 [shape = 'u32[]', space=smem, size = 0x4, offset = 0x4, fixed_abs, tag = 'smem constant byte address 0x4 - core index']
  #allocation1 [shape = 'u32[72,128]{1,0:T(1,128)}', space=vmem, size = 0x9000, scoped, tag = 'internal scratch']
  %s0 = inlined_call_operand.vmem [shape: f32[2,128], index: 0, kind: input, shape index: {}]
  %s1 = inlined_call_operand.hbm [shape: f32[200,128], index: 1, kind: input, shape index: {}]
  %s2 = inlined_call_operand.vmem [shape: f32[1,128], index: 2, kind: output, shape index: {}]
  %s3 = sld [smem:[#allocation0]]
  $region22: #{simple_nn_forward.1} parent=0
    _
  %s5 = ssub.s32 1, %s3
  %s6 = scalar_select 0, %s5, %s3
  $region1: #{simple_nn_forward.1} parent=0
    #allocation2 [shape = 'u8[102400]{0}', space=vmem, size = 0x19000, scoped, tag = 'input window, operand 1, single buffered']
    #allocation3 [shape = 's32[1]{0}', space=sflag, size = 0x4, scoped, tag = 'scoped memory for simple_nn_forward.1']
    %7 = vsyncpa [#allocation3], 0
    // Predicated region
    $region2: #{simple_nn_forward.1} parent=1 // pred_check
      _
    $region3: #{simple_nn_forward.1} parent=1 // pred_check_branch
      %9 = sbr.rel (0) target = $region5
    $region4: #{simple_nn_forward.1} parent=1 // pred_region
      _
    $region5: #{simple_nn_forward.1} parent=1 // pred_fallthru
      _
    // Predicated region
    $region6: #{simple_nn_forward.1} parent=1 // pred_check
      _
    $region7: #{simple_nn_forward.1} parent=1 // pred_check_branch
      %11 = sbr.rel (0) target = $region9
    $region8: #{simple_nn_forward.1} parent=1 // pred_region
      %13 = vsyncadd [#allocation3], 0
      %s14 = sshll.u32 %s1, 4
      %s15 = int_to_ptr.hbm [resolvable:$true] %s14
      %s16 = sshll.u32 [#allocation2], 4
      %s17 = int_to_ptr.vmem [resolvable:$true] %s16
      %22 = dma.hbm_to_vmem [thread:$0]  %s15, 3200, %s17, [#allocation3], 128, 128, 8
    $region9: #{simple_nn_forward.1} parent=1 // pred_fallthru
      _
    // Predicated region
    $region10: #{simple_nn_forward.1} parent=1 // pred_check
      _
    $region11: #{simple_nn_forward.1} parent=1 // pred_check_branch
      %24 = sbr.rel (0) target = $region13
    $region12: #{simple_nn_forward.1} parent=1 // pred_region
      %26 = dma.done [#allocation3], 3200
    $region13: #{simple_nn_forward.1} parent=1 // pred_fallthru
      _
    %v27 = vld [vmem:[#allocation2] sm:$0xff]
    %v28 = vld [vmem:[#allocation2 + $0x8] sm:$0xff]
    %v29 = vld [vmem:[#allocation2 + $0x10] sm:$0xff]
    %v30 = vld [vmem:[#allocation2 + $0x18] sm:$0xff]
    %v31 = vld [vmem:[#allocation2 + $0x20] sm:$0xff]
    %v32 = vld [vmem:[#allocation2 + $0x28] sm:$0xff]
    %v33 = vld [vmem:[#allocation2 + $0x30] sm:$0xff]
    %v34 = vld [vmem:[#allocation2 + $0x38] sm:$0xff]
    %v35 = vld [vmem:[#allocation2 + $0x40] sm:$0xff]
    %v36 = vld [vmem:[#allocation2 + $0x48] sm:$0xff]
    %v37 = vld [vmem:[#allocation2 + $0x50] sm:$0xff]
    %v38 = vld [vmem:[#allocation2 + $0x58] sm:$0xff]
    %v39 = vld [vmem:[#allocation2 + $0x60] sm:$0xff]
    %v40 = vld [vmem:[#allocation2 + $0x68] sm:$0xff]
    %v41 = vld [vmem:[#allocation2 + $0x70] sm:$0xff]
    %v42 = vld [vmem:[#allocation2 + $0x78] sm:$0xff]
    %v43 = vld [vmem:[#allocation2 + $0x80] sm:$0xff]
    %v44 = vld [vmem:[#allocation2 + $0x88] sm:$0xff]
    %v45 = vld [vmem:[#allocation2 + $0x90] sm:$0xff]
    %v46 = vld [vmem:[#allocation2 + $0x98] sm:$0xff]
    %v47 = vld [vmem:[#allocation2 + $0xa0] sm:$0xff]
    %v48 = vld [vmem:[#allocation2 + $0xa8] sm:$0xff]
    %v49 = vld [vmem:[#allocation2 + $0xb0] sm:$0xff]
    %v50 = vld [vmem:[#allocation2 + $0xb8] sm:$0xff]
    %v51 = vld [vmem:[#allocation2 + $0xc0] sm:$0x1]
    %v52 = vld [vmem:[%s0] sm:$0x1]
    %v53 = vld [vmem:[%s0 + $0x1] sm:$0x1]
    %v54 = vperm.slane %v52, 0
    %v55 = vmul.f32 %v27, %v54
    %v56 = vmul.f32 %v28, %v54
    %v57 = vperm.slane %v53, 0
    %v58 = vmul.f32 %v29, %v57
    %v59 = vmul.f32 %v30, %v57
    %v60 = vadd.f32 %v55, %v58
    %v61 = vadd.f32 %v56, %v59
    %v62 = vadd.f32 %v60, %v31
    %v63 = vadd.f32 %v61, %v32
    %v64 = vmax.f32 %v62, 0.0
    %v65 = vmax.f32 %v63, 0.0
    %v66 = vperm.slane %v64, 0
    %v67 = vmul.f32 %v33, %v66
    %v68 = vadd.f32 %v49, %v67
    %v69 = vperm.slane %v64, 1
    %v70 = vmul.f32 %v34, %v69
    %v71 = vadd.f32 %v68, %v70
    %v72 = vperm.slane %v64, 2
    %v73 = vmul.f32 %v35, %v72
    %v74 = vadd.f32 %v71, %v73
    %v75 = vperm.slane %v64, 3
    %v76 = vmul.f32 %v36, %v75
    %v77 = vadd.f32 %v74, %v76
    %v78 = vperm.slane %v64, 4
    %v79 = vmul.f32 %v37, %v78
    %v80 = vadd.f32 %v77, %v79
    %v81 = vperm.slane %v64, 5
    %v82 = vmul.f32 %v38, %v81
    %v83 = vadd.f32 %v80, %v82
    %v84 = vperm.slane %v64, 6
    %v85 = vmul.f32 %v39, %v84
    %v86 = vadd.f32 %v83, %v85
    %v87 = vperm.slane %v64, 7
    %v88 = vmul.f32 %v40, %v87
    %v89 = vadd.f32 %v86, %v88
    %v90 = vperm.slane %v65, 0
    %v91 = vmul.f32 %v41, %v90
    %v92 = vadd.f32 %v89, %v91
    %v93 = vperm.slane %v65, 1
    %v94 = vmul.f32 %v42, %v93
    %v95 = vadd.f32 %v92, %v94
    %v96 = vperm.slane %v65, 2
    %v97 = vmul.f32 %v43, %v96
    %v98 = vadd.f32 %v95, %v97
    %v99 = vperm.slane %v65, 3
    %v100 = vmul.f32 %v44, %v99
    %v101 = vadd.f32 %v98, %v100
    %v102 = vperm.slane %v65, 4
    %v103 = vmul.f32 %v45, %v102
    %v104 = vadd.f32 %v101, %v103
    %v105 = vperm.slane %v65, 5
    %v106 = vmul.f32 %v46, %v105
    %v107 = vadd.f32 %v104, %v106
    %v108 = vperm.slane %v65, 6
    %v109 = vmul.f32 %v47, %v108
    %v110 = vadd.f32 %v107, %v109
    %v111 = vperm.slane %v65, 7
    %v112 = vmul.f32 %v48, %v111
    %v113 = vadd.f32 %v110, %v112
    %v114 = vmax.f32 %v113, 0.0
    %v115 = vmul.f32 %v50, %v114
    %v116 = vrot.slane %v115, 4
    %v117 = vadd.f32 %v115, %v116
    %v118 = vrot.slane %v117, 2
    %v119 = vadd.f32 %v117, %v118
    %v120 = vrot.slane %v119, 1
    %v121 = vadd.f32 %v119, %v120
    %v122 = vadd.f32 %v121, %v51
    %v123 = vand.u32 2147483647, %v122
    %v124 = vsub.f32 0.0, %v123
    %v125 = vmul.f32 %v124, 1.442695
    %v126 = vpow.pop %v125
    %vm127 = vcmp.ge.f32.partialorder %v122, 0.0
    %v128 = vsel %vm127, 1.0, %v126
    %v129 = vadd.f32 %v126, 1.0
    %v130 = vrcp.pop %v129
    %v131 = vmul.f32 %v128, %v130
    %132 = vst [vmem:[%s2] sm:$0x1] %v131
    // Predicated region
    $region14: #{simple_nn_forward.1} parent=1 // pred_check
      _
    $region15: #{simple_nn_forward.1} parent=1 // pred_check_branch
      %134 = sbr.rel (0) target = $region17
    $region16: #{simple_nn_forward.1} parent=1 // pred_region
      _
    $region17: #{simple_nn_forward.1} parent=1 // pred_fallthru
      _
    // Predicated region
    $region18: #{simple_nn_forward.1} parent=1 // pred_check
      _
    $region19: #{simple_nn_forward.1} parent=1 // pred_check_branch
      %136 = sbr.rel (0) target = $region21
    $region20: #{simple_nn_forward.1} parent=1 // pred_region
      _
    $region21: #{simple_nn_forward.1} parent=1 // pred_fallthru
      _
    %137 = vsyncpa [#allocation3], 1

</llo_original>
